<compile_context>
chip_gen: v5e
topology: v5e:2x2
jax: 0.10.0
libtpu: 0.0.40
codegen_flags: <defaults>
</compile_context>

<pallas_src>
import math

import jax
import jax.numpy as jnp
from jax.experimental import pallas as pl
from jax.experimental.pallas import tpu as pltpu


_TINY_XLA_BYTES = 4096      # below ~one vreg of data, XLA fuses the add for free
_MAX_LANE_TILE = 2048       # lanes per block (128-aligned) before tiling lanes


# ---------------------------------------------------------------------------
# Kernel (shared): bias broadcasts from either (1, TL) or (TR, 1)
# ---------------------------------------------------------------------------
def _add_bias_kernel(x_ref, b_ref, o_ref):
    o_ref[...] = x_ref[...] + b_ref[...]


# ---------------------------------------------------------------------------
# Generation-aware tiling helpers
# ---------------------------------------------------------------------------
def _vmem_capacity_bytes():
    """Physical VMEM per TensorCore; defensive fallback if the query fails."""
    try:
        info = pltpu.get_tpu_info()
        for attr in ("vmem_capacity_bytes", "vmem_size_bytes", "vmem_bytes"):
            val = getattr(info, attr, None)
            if val:
                return int(val)
    except Exception:
        pass
    return 64 << 20          # conservative default: v7x per-TC VMEM


def _block_target_bytes(vmem_cap):
    # v5e/v6e (128 MiB VMEM): 8 MiB x-blocks (double-buffered x+out ~= 32 MiB).
    # v7x (64 MiB VMEM, 3.2 TB/s HBM): 4 MiB blocks keep the pipeline footprint
    # ~16 MiB while per-step DMA still dwarfs the ~0.35 us fixed step overhead.
    return (8 << 20) if vmem_cap >= (100 << 20) else (4 << 20)


def _sublane_pack(itemsize):
    # f32 -> 8, bf16 -> 16, int8/fp8 -> 32 : keeps packed vreg tiles full-width.
    return 8 * max(1, 4 // int(itemsize))


def _choose_tiles(rows, lanes, itemsize, block_target_bytes):
    pack = _sublane_pack(itemsize)
    tl = lanes if lanes <= _MAX_LANE_TILE else _MAX_LANE_TILE
    tr = block_target_bytes // max(1, tl * itemsize)
    tr = max(pack, (tr // pack) * pack)
    if tr >= rows:
        tr = rows                       # full extent is always legal
    # v7x has two TensorCores: if everything landed in a single block but the
    # row axis can be split on a sublane-pack boundary, split it in two so both
    # cores stream independent halves.
    if pl.cdiv(rows, tr) * pl.cdiv(lanes, tl) == 1 and rows >= 2 * pack:
        half = (rows + 1) // 2
        tr = ((half + pack - 1) // pack) * pack
    return tr, tl


def _vmem_limit_bytes(block_bytes, vmem_cap):
    # x + out, double-buffered, plus bias and headroom; capped under physical
    # VMEM (64 MiB/TC on v7x, 128 MiB on v5e/v6e).
    want = max(16 << 20, 4 * block_bytes + (8 << 20))
    return int(min(want, int(0.75 * vmem_cap)))


# ---------------------------------------------------------------------------
# Tiled pallas_call over a lane-dense 2-D view
# ---------------------------------------------------------------------------
def _run_bias_add(x2d, bias2d, bias_is_row, donate_x=False):
    rows, lanes = x2d.shape
    itemsize = jnp.dtype(x2d.dtype).itemsize
    vmem_cap = _vmem_capacity_bytes()
    tr, tl = _choose_tiles(rows, lanes, itemsize, _block_target_bytes(vmem_cap))
    vmem_limit = _vmem_limit_bytes(tr * tl * itemsize, vmem_cap)
    gr, gl = pl.cdiv(rows, tr), pl.cdiv(lanes, tl)

    if bias_is_row and gl > 1:
        # (1, TL) bias depends on the lane block: make rows the fastest grid
        # axis so the bias tile stays resident across consecutive steps.
        grid = (gl, gr)
        xmap = lambda j, i: (i, j)
        bmap = lambda j, i: (0, j)
    else:
        # Rows lead (largest extent -> megacore-sharded axis); lanes fastest.
        # For the (TR, 1) row bias this keeps the bias resident over the inner
        # lane loop as well.
        grid = (gr, gl)
        xmap = lambda i, j: (i, j)
        bmap = (lambda i, j: (0, j)) if bias_is_row else (lambda i, j: (i, 0))

    bias_block = (1, tl) if bias_is_row else (tr, 1)

    kwargs = {}
    if donate_x:
        # Caller guarantees x may be overwritten: reuse its HBM buffer.
        kwargs["input_output_aliases"] = {0: 0}

    return pl.pallas_call(
        _add_bias_kernel,
        out_shape=jax.ShapeDtypeStruct((rows, lanes), x2d.dtype),
        grid_spec=pl.GridSpec(
            grid=grid,
            in_specs=[
                pl.BlockSpec((tr, tl), xmap),
                pl.BlockSpec(bias_block, bmap),
            ],
            out_specs=pl.BlockSpec((tr, tl), xmap),
        ),
        compiler_params=pltpu.CompilerParams(
            dimension_semantics=("parallel", "parallel"),
            vmem_limit_bytes=vmem_limit,
        ),
        **kwargs,
    )(x2d, bias2d)


# ---------------------------------------------------------------------------
# AddBias.forward wrapper
# ---------------------------------------------------------------------------
def add_bias(x, bias_param, *, donate_x=False):
    """bias_param has shape (C, 1), mirroring nn.Parameter(bias.unsqueeze(1))."""
    C = bias_param.shape[0]
    if x.ndim not in (2, 4):
        raise ValueError(f"AddBias expects 2D or 4D input, got ndim={x.ndim}")

    # Match PyTorch type promotion (e.g. bf16 x + f32 bias -> f32 output).
    out_dtype = jnp.result_type(x.dtype, bias_param.dtype)
    bias_vec = bias_param.reshape(C).astype(out_dtype)
    xd = x if x.dtype == out_dtype else x.astype(out_dtype)
    itemsize = jnp.dtype(out_dtype).itemsize

    # Tiny tensors: a (1,1)-grid pallas_call is pure launch overhead (and would
    # idle one v7x TensorCore); XLA fuses the broadcast add for free.
    if xd.size * itemsize < _TINY_XLA_BYTES:
        shape = (1, C) if x.ndim == 2 else (1, C, 1, 1)
        return xd + bias_vec.reshape(shape)

    if x.ndim == 2:
        N, Cx = xd.shape
        assert Cx == C
        if C >= 128:
            # Lane axis already dense: natural (N, C) layout + (1, C) bias row.
            return _run_bias_add(xd, bias_vec.reshape(1, C), True, donate_x)
        # Small C: keeping C on lanes would leave >95% of lanes idle and turn
        # every store into a masked vst.msk.  Repack row-major to a lane-dense
        # (N*C/L, L) view with L = lcm(C, 128); every repacked row then sees
        # the same tiled bias pattern.
        L = math.lcm(C, 128)
        total = N * C
        if L <= _MAX_LANE_TILE and total % L == 0:
            x_flat = xd.reshape(total // L, L)
            b_row = jnp.tile(bias_vec, L // C).reshape(1, L)
            out = _run_bias_add(x_flat, b_row, True, donate_x)
            return out.reshape(N, C)
        # Awkward shapes (N*C not an L-multiple): natural narrow-lane fallback.
        return _run_bias_add(xd, bias_vec.reshape(1, C), True, donate_x)

    # ---- 4D NCHW ----
    N, Cx, H, W = xd.shape
    assert Cx == C
    HW = H * W
    if HW >= 128 and HW % 128 == 0:
        # Dense spatial axis on lanes: (N*C, HW) with a per-row bias column.
        # NOTE: reshape is free only for contiguous NCHW inputs.
        x_flat = xd.reshape(N * C, HW)
        b_col = jnp.tile(bias_vec.reshape(C, 1), (N, 1))        # (N*C, 1)
        out = _run_bias_add(x_flat, b_col, False, donate_x)
        return out.reshape(N, C, H, W)
    # Small / odd feature maps (7x7, 14x14, ...): fold channels into the lane
    # axis so stores stay (mostly) unmasked 128-wide.
    x_flat = xd.reshape(N, C * HW)
    b_row = jnp.repeat(bias_vec, HW).reshape(1, C * HW)
    out = _run_bias_add(x_flat, b_row, True, donate_x)
    return out.reshape(N, C, H, W)


# ---------------------------------------------------------------------------
# Main
# ---------------------------------------------------------------------------
if __name__ == "__main__":
    key = jax.random.PRNGKey(0)
    keys = jax.random.split(key, 8)

    C = 4
    bias_vec = jax.random.normal(keys[0], (C,), dtype=jnp.float32)
    bias_param = bias_vec[:, None]                              # (C, 1)

    # 4D NCHW, HW a 128-multiple -> (N*C, HW) row-bias Pallas path.
    x4 = jax.random.normal(keys[1], (2, C, 16, 16), dtype=jnp.float32)
    out4 = jax.block_until_ready(add_bias(x4, bias_param))
    ref4 = x4 + bias_vec.reshape(1, C, 1, 1)
    assert out4.shape == x4.shape and out4.dtype == x4.dtype
    assert jnp.allclose(out4, ref4, atol=1e-6), "4D (dense HW) mismatch"

    # 4D NCHW, odd HW (14x14) -> channel-folded (N, C*HW) col-bias Pallas path.
    x4b = jax.random.normal(keys[2], (2, C, 14, 14), dtype=jnp.float32)
    out4b = jax.block_until_ready(add_bias(x4b, bias_param))
    ref4b = x4b + bias_vec.reshape(1, C, 1, 1)
    assert out4b.shape == x4b.shape and out4b.dtype == x4b.dtype
    assert jnp.allclose(out4b, ref4b, atol=1e-6), "4D (odd HW) mismatch"

    # 2D tiny (2, C) -> XLA bypass (single-vreg tensor).
    x2 = jax.random.normal(keys[3], (2, C), dtype=jnp.float32)
    out2 = jax.block_until_ready(add_bias(x2, bias_param))
    ref2 = x2 + bias_vec.reshape(1, C)
    assert out2.shape == x2.shape and out2.dtype == x2.dtype
    assert jnp.allclose(out2, ref2, atol=1e-6), "2D (tiny) mismatch"

    # 2D small-C, bigger N -> lane-dense repacked (N*C/128, 128) Pallas path.
    x2b = jax.random.normal(keys[4], (512, C), dtype=jnp.float32)
    out2b = jax.block_until_ready(add_bias(x2b, bias_param))
    ref2b = x2b + bias_vec.reshape(1, C)
    assert out2b.shape == x2b.shape and out2b.dtype == x2b.dtype
    assert jnp.allclose(out2b, ref2b, atol=1e-6), "2D (small C, repacked) mismatch"

    # 2D wide-C (C >= 128) -> natural column-bias Pallas path.
    C2 = 256
    bias2_vec = jax.random.normal(keys[5], (C2,), dtype=jnp.float32)
    x2c = jax.random.normal(keys[6], (16, C2), dtype=jnp.float32)
    out2c = jax.block_until_ready(add_bias(x2c, bias2_vec[:, None]))
    ref2c = x2c + bias2_vec.reshape(1, C2)
    assert out2c.shape == x2c.shape and out2c.dtype == x2c.dtype
    assert jnp.allclose(out2c, ref2c, atol=1e-6), "2D (wide C) mismatch"

    print("KERNEL_OK")
</pallas_src>

<mosaic_0001>
module attributes {stable_mosaic.version = 11 : i64} {
  func.func @_add_bias_kernel(%arg0: i32, %arg1: i32, %arg2: memref<8x256xf32, #tpu.memory_space<vmem>>, %arg3: memref<8x1xf32, #tpu.memory_space<vmem>>, %arg4: memref<8x256xf32, #tpu.memory_space<vmem>>) attributes {dimension_semantics = [#tpu.dimension_semantics<parallel>, #tpu.dimension_semantics<parallel>], iteration_bounds = array<i64: 1, 1>, scalar_prefetch = 0 : i64, scratch_operands = 0 : i64, tpu.core_type = #tpu.core_type<tc>, window_params = [{transform_indices = @transform_0, window_bounds = array<i64: 8, 256>}, {transform_indices = @transform_1, window_bounds = array<i64: 8, 1>}, {transform_indices = @transform_2, window_bounds = array<i64: 8, 256>}]} {
    %c0 = arith.constant 0 : index
    %c0_0 = arith.constant 0 : index
    %0 = vector.load %arg2[%c0, %c0_0] : memref<8x256xf32, #tpu.memory_space<vmem>>, vector<8x256xf32>
    %c0_1 = arith.constant 0 : index
    %c0_2 = arith.constant 0 : index
    %1 = vector.load %arg3[%c0_1, %c0_2] : memref<8x1xf32, #tpu.memory_space<vmem>>, vector<8x1xf32>
    %2 = vector.broadcast %1 : vector<8x1xf32> to vector<8x256xf32>
    %3 = arith.addf %0, %2 : vector<8x256xf32>
    %c0_3 = arith.constant 0 : index
    %c0_4 = arith.constant 0 : index
    %4 = vector.load %arg4[%c0_3, %c0_4] : memref<8x256xf32, #tpu.memory_space<vmem>>, vector<8x256xf32>
    tpu.vector_store %arg4[%c0_3, %c0_4], %3 {strides = array<i32>} : memref<8x256xf32, #tpu.memory_space<vmem>>, vector<8x256xf32>,
    return
  }
  func.func @transform_0(%arg0: i32, %arg1: i32) -> (i32, i32) {
    %c0_i32 = arith.constant 0 : i32
    return %arg0, %arg1 : i32, i32
  }
  func.func @transform_1(%arg0: i32, %arg1: i32) -> (i32, i32) {
    %c0_i32 = arith.constant 0 : i32
    %c0_i32_0 = arith.constant 0 : i32
    return %arg0, %c0_i32 : i32, i32
  }
  func.func @transform_2(%arg0: i32, %arg1: i32) -> (i32, i32) {
    %c0_i32 = arith.constant 0 : i32
    return %arg0, %arg1 : i32, i32
  }
}

</mosaic_0001>

<llo_original>
// kernel: tpu_custom_call.1
$region0: #{tpu_custom_call.1}
  #allocation0 [shape = 'u32[]', space=smem, size = 0x4, offset = 0x4, fixed_abs, tag = 'smem constant byte address 0x4 - core index']
  #allocation1 [shape = 'u32[72,128]{1,0:T(1,128)}', space=vmem, size = 0x9000, scoped, tag = 'internal scratch']
  %s0 = inlined_call_operand.hbm [shape: f32[8,256], index: 0, kind: input, shape index: {}]
  %s1 = inlined_call_operand.vmem [shape: f32[8,1], index: 1, kind: input, shape index: {}]
  %s2 = inlined_call_operand.hbm [shape: f32[8,256], index: 2, kind: output, shape index: {}]
  %s3 = sld [smem:[#allocation0]]
  $region22: #{tpu_custom_call.1} parent=0
    _
  %s5 = ssub.s32 1, %s3
  %s6 = scalar_select 0, %s5, %s3
  $region1: #{tpu_custom_call.1} parent=0
    #allocation2 [shape = 'u8[8192]{0}', space=vmem, size = 0x2000, scoped, tag = 'input window, operand 0, single buffered']
    #allocation3 [shape = 's32[1]{0}', space=sflag, size = 0x4, scoped, tag = 'scoped memory for tpu_custom_call.1']
    #allocation4 [shape = 's32[1]{0}', space=sflag, size = 0x4, scoped, tag = 'scoped memory for tpu_custom_call.1']
    #allocation5 [shape = 'u8[8192]{0}', space=vmem, size = 0x2000, scoped, tag = 'output window, operand 0, single buffered']
    %7 = vsyncpa [#allocation3], 0
    %8 = vsyncpa [#allocation4], 0
    // Predicated region
    $region2: #{tpu_custom_call.1} parent=1 // pred_check
      _
    $region3: #{tpu_custom_call.1} parent=1 // pred_check_branch
      %10 = sbr.rel (0) target = $region5
    $region4: #{tpu_custom_call.1} parent=1 // pred_region
      %12 = vsyncadd [#allocation3], 0
      %s14 = sshll.u32 %s0, 4
      %s15 = int_to_ptr.hbm [resolvable:$true] %s14
      %s16 = sshll.u32 [#allocation2], 4
      %s17 = int_to_ptr.vmem [resolvable:$true] %s16
      %19 = dma.hbm_to_vmem [thread:$0]  %s15, 256, %s17, [#allocation3]
    $region5: #{tpu_custom_call.1} parent=1 // pred_fallthru
      _
    // Predicated region
    $region6: #{tpu_custom_call.1} parent=1 // pred_check
      _
    $region7: #{tpu_custom_call.1} parent=1 // pred_check_branch
      %21 = sbr.rel (0) target = $region9
    $region8: #{tpu_custom_call.1} parent=1 // pred_region
      _
    $region9: #{tpu_custom_call.1} parent=1 // pred_fallthru
      _
    // Predicated region
    $region10: #{tpu_custom_call.1} parent=1 // pred_check
      _
    $region11: #{tpu_custom_call.1} parent=1 // pred_check_branch
      %23 = sbr.rel (0) target = $region13
    $region12: #{tpu_custom_call.1} parent=1 // pred_region
      %25 = dma.done [#allocation3], 256
    $region13: #{tpu_custom_call.1} parent=1 // pred_fallthru
      _
    %v26 = vld [vmem:[#allocation2] sm:$0xff]
    %v27 = vld [vmem:[#allocation2 + $0x8] sm:$0xff]
    %v28 = vld [vmem:[%s1] sm:$0xff]
    %30 = vset.pattern.permute.xlu0 0
    %31 = vperm.xlu0 %30, %v28
    %v32 = vpop.permute.xlu0 %31
    %v34 = vadd.f32 %v26, %v32
    %v35 = vadd.f32 %v27, %v32
    %36 = vst [vmem:[#allocation5] sm:$0xff] %v34
    %37 = vst [vmem:[#allocation5 + $0x8] sm:$0xff] %v35
    // Predicated region
    $region14: #{tpu_custom_call.1} parent=1 // pred_check
      _
    $region15: #{tpu_custom_call.1} parent=1 // pred_check_branch
      %39 = sbr.rel (0) target = $region17
    $region16: #{tpu_custom_call.1} parent=1 // pred_region
      %41 = vsyncadd [#allocation4], 0
      %s43 = sshll.u32 [#allocation5], 4
      %s44 = int_to_ptr.vmem [resolvable:$true] %s43
      %s45 = sshll.u32 %s2, 4
      %s46 = int_to_ptr.hbm [resolvable:$true] %s45
      %48 = dma.vmem_to_hbm [thread:$0]  %s44, 256, %s46, [#allocation4]
    $region17: #{tpu_custom_call.1} parent=1 // pred_fallthru
      _
    // Predicated region
    $region18: #{tpu_custom_call.1} parent=1 // pred_check
      _
    $region19: #{tpu_custom_call.1} parent=1 // pred_check_branch
      %50 = sbr.rel (0) target = $region21
    $region20: #{tpu_custom_call.1} parent=1 // pred_region
      %52 = dma.done [#allocation4], 256
    $region21: #{tpu_custom_call.1} parent=1 // pred_fallthru
      _
    %53 = vsyncpa [#allocation3], 1
    %54 = vsyncpa [#allocation4], 1

</llo_original>
